<compile_context>
chip_gen: v5e
topology: v5e:2x2
jax: 0.10.0
libtpu: 0.0.40
codegen_flags: <defaults>
</compile_context>

<pallas_src>
import functools

import jax
import jax.numpy as jnp
from jax import lax
from jax.experimental import pallas as pl
from jax.experimental.pallas import tpu as pltpu


def _round_up(x, m):
    return (x + m - 1) // m * m


def actor_kernel(x_ref, w1_ref, b1_ref, w2_ref, b2_ref, w3_ref, b3_ref,
                 probs_ref, *, action_size):
    # Fused MLP head: Linear -> ReLU -> Linear -> ReLU -> Linear -> softmax.
    x = x_ref[...]
    h1 = jnp.dot(x, w1_ref[...], preferred_element_type=jnp.float32) + b1_ref[...]
    h1 = jnp.maximum(h1, 0.0)
    h2 = jnp.dot(h1, w2_ref[...], preferred_element_type=jnp.float32) + b2_ref[...]
    h2 = jnp.maximum(h2, 0.0)
    logits = jnp.dot(h2, w3_ref[...], preferred_element_type=jnp.float32) + b3_ref[...]

    # Mask the zero-padded action lanes so the softmax only sees real actions.
    lane = lax.broadcasted_iota(jnp.int32, logits.shape, dimension=1)
    logits = jnp.where(lane < action_size, logits, jnp.float32(-1e30))

    # Numerically-stable softmax (exact divide to keep bit-level parity with reference).
    m = jnp.max(logits, axis=-1, keepdims=True)
    e = jnp.exp(logits - m)
    denom = jnp.sum(e, axis=-1, keepdims=True)
    probs_ref[...] = (e / denom).astype(probs_ref.dtype)


def actor_forward(state, padded_params, action_size, *, block_m=128):
    """state: (B, state_size) f32 -> action probabilities: (B, action_size) f32."""
    w1, b1, w2, b2, w3, b3 = padded_params
    B, S = state.shape
    S_pad = w1.shape[0]
    H_pad = w1.shape[1]
    A_pad = w3.shape[1]
    B_pad = _round_up(max(B, 1), block_m)

    # Zero-pad activations: padded feature columns meet zero weight rows -> no effect.
    x = jnp.zeros((B_pad, S_pad), jnp.float32).at[:B, :S].set(state.astype(jnp.float32))

    kernel = functools.partial(actor_kernel, action_size=action_size)

    probs_padded = pl.pallas_call(
        kernel,
        out_shape=jax.ShapeDtypeStruct((B_pad, A_pad), jnp.float32),
        grid_spec=pltpu.PrefetchScalarGridSpec(
            num_scalar_prefetch=0,
            grid=(B_pad // block_m,),
            in_specs=[
                pl.BlockSpec((block_m, S_pad), lambda i: (i, 0)),   # x: tiled over batch
                pl.BlockSpec((S_pad, H_pad), lambda i: (0, 0)),     # w1: resident
                pl.BlockSpec((1, H_pad), lambda i: (0, 0)),         # b1
                pl.BlockSpec((H_pad, H_pad), lambda i: (0, 0)),     # w2
                pl.BlockSpec((1, H_pad), lambda i: (0, 0)),         # b2
                pl.BlockSpec((H_pad, A_pad), lambda i: (0, 0)),     # w3
                pl.BlockSpec((1, A_pad), lambda i: (0, 0)),         # b3
            ],
            out_specs=pl.BlockSpec((block_m, A_pad), lambda i: (i, 0)),
        ),
        compiler_params=pltpu.CompilerParams(
            dimension_semantics=("parallel",),
        ),
    )(x, w1, b1, w2, b2, w3, b3)

    return probs_padded[:B, :action_size]


def init_actor_params(key, state_size, action_size, hidden=64):
    """Deterministic init mimicking PyTorch's default Linear init:
    U(-1/sqrt(fan_in), 1/sqrt(fan_in)) for both weights and biases.
    Weights stored as (in, out) so the kernel computes x @ W + b (== x @ W_pt.T + b)."""
    ks = jax.random.split(key, 6)

    def uniform(k, shape, fan_in):
        bound = 1.0 / jnp.sqrt(jnp.asarray(fan_in, jnp.float32))
        return jax.random.uniform(k, shape, jnp.float32, -bound, bound)

    w1 = uniform(ks[0], (state_size, hidden), state_size)
    b1 = uniform(ks[1], (1, hidden), state_size)
    w2 = uniform(ks[2], (hidden, hidden), hidden)
    b2 = uniform(ks[3], (1, hidden), hidden)
    w3 = uniform(ks[4], (hidden, action_size), hidden)
    b3 = uniform(ks[5], (1, action_size), hidden)
    return (w1, b1, w2, b2, w3, b3)


def pad_actor_params(params, *, lane=128):
    """Zero-pad every feature dimension up to a multiple of 128 lanes (done once,
    outside the hot path). Zero padding is exact: padded inputs/hiddens multiply
    zero weight rows, and padded action logits are masked inside the kernel."""
    w1, b1, w2, b2, w3, b3 = params
    S, H = w1.shape
    A = w3.shape[1]
    S_pad = _round_up(S, lane)
    H_pad = _round_up(H, lane)
    A_pad = _round_up(A, lane)

    def pad2(a, rows, cols):
        return jnp.zeros((rows, cols), a.dtype).at[:a.shape[0], :a.shape[1]].set(a)

    return (pad2(w1, S_pad, H_pad), pad2(b1, 1, H_pad),
            pad2(w2, H_pad, H_pad), pad2(b2, 1, H_pad),
            pad2(w3, H_pad, A_pad), pad2(b3, 1, A_pad))


def actor_reference(state, params):
    """Pure-JAX reference of the PyTorch forward pass (probabilities of Categorical)."""
    w1, b1, w2, b2, w3, b3 = params
    h1 = jnp.maximum(state @ w1 + b1, 0.0)
    h2 = jnp.maximum(h1 @ w2 + b2, 0.0)
    logits = h2 @ w3 + b3
    return jax.nn.softmax(logits, axis=-1)


if __name__ == "__main__":
    key = jax.random.PRNGKey(0)
    k_params, k_state = jax.random.split(key)

    batch = 8
    state_size = 32   # arbitrary dialog-state vector size
    action_size = 8   # small discrete action space

    params = init_actor_params(k_params, state_size, action_size)
    padded_params = pad_actor_params(params)
    state = jax.random.normal(k_state, (batch, state_size), jnp.float32)

    probs = actor_forward(state, padded_params, action_size)
    probs = jax.block_until_ready(probs)

    ref = actor_reference(state, params)
    assert probs.shape == (batch, action_size)
    assert jnp.allclose(probs, ref, atol=1e-5, rtol=1e-5), "mismatch vs reference"
    assert jnp.allclose(jnp.sum(probs, axis=-1), 1.0, atol=1e-5), "probs do not sum to 1"

    print("KERNEL_OK")
</pallas_src>

<mosaic_0001>
module attributes {stable_mosaic.version = 11 : i64} {
  func.func @actor_kernel(%arg0: i32, %arg1: memref<128x128xf32, #tpu.memory_space<vmem>>, %arg2: memref<128x128xf32, #tpu.memory_space<vmem>>, %arg3: memref<1x128xf32, #tpu.memory_space<vmem>>, %arg4: memref<128x128xf32, #tpu.memory_space<vmem>>, %arg5: memref<1x128xf32, #tpu.memory_space<vmem>>, %arg6: memref<128x128xf32, #tpu.memory_space<vmem>>, %arg7: memref<1x128xf32, #tpu.memory_space<vmem>>, %arg8: memref<128x128xf32, #tpu.memory_space<vmem>>) attributes {dimension_semantics = [#tpu.dimension_semantics<parallel>], iteration_bounds = array<i64: 1>, scalar_prefetch = 0 : i64, scratch_operands = 0 : i64, tpu.core_type = #tpu.core_type<tc>, window_params = [{transform_indices = @transform_0, window_bounds = array<i64: 128, 128>}, {pipeline_mode = #tpu.pipeline_mode<synchronous>, transform_indices = @transform_1, window_bounds = array<i64: 128, 128>}, {pipeline_mode = #tpu.pipeline_mode<synchronous>, transform_indices = @transform_2, window_bounds = array<i64: 1, 128>}, {pipeline_mode = #tpu.pipeline_mode<synchronous>, transform_indices = @transform_3, window_bounds = array<i64: 128, 128>}, {pipeline_mode = #tpu.pipeline_mode<synchronous>, transform_indices = @transform_4, window_bounds = array<i64: 1, 128>}, {pipeline_mode = #tpu.pipeline_mode<synchronous>, transform_indices = @transform_5, window_bounds = array<i64: 128, 128>}, {pipeline_mode = #tpu.pipeline_mode<synchronous>, transform_indices = @transform_6, window_bounds = array<i64: 1, 128>}, {transform_indices = @transform_7, window_bounds = array<i64: 128, 128>}]} {
    %c0 = arith.constant 0 : index
    %c0_0 = arith.constant 0 : index
    %0 = vector.load %arg1[%c0, %c0_0] : memref<128x128xf32, #tpu.memory_space<vmem>>, vector<128x128xf32>
    %c0_1 = arith.constant 0 : index
    %c0_2 = arith.constant 0 : index
    %1 = vector.load %arg2[%c0_1, %c0_2] : memref<128x128xf32, #tpu.memory_space<vmem>>, vector<128x128xf32>
    %cst = arith.constant dense<0.000000e+00> : vector<128x128xf32>
    %2 = tpu.matmul %0, %1, %cst {dimension_numbers = #tpu.dot_dimension_numbers<[1], [0], [0], [1], [0, 0, 1, 1], [], []>} : vector<128x128xf32>, vector<128x128xf32>, vector<128x128xf32> -> vector<128x128xf32>
    %c0_3 = arith.constant 0 : index
    %c0_4 = arith.constant 0 : index
    %3 = vector.load %arg3[%c0_3, %c0_4] : memref<1x128xf32, #tpu.memory_space<vmem>>, vector<1x128xf32>
    %4 = vector.broadcast %3 : vector<1x128xf32> to vector<128x128xf32>
    %5 = arith.addf %2, %4 : vector<128x128xf32>
    %cst_5 = arith.constant 0.000000e+00 : f32
    %6 = vector.broadcast %cst_5 : f32 to vector<128x128xf32>
    %7 = arith.maximumf %5, %6 : vector<128x128xf32>
    %c0_6 = arith.constant 0 : index
    %c0_7 = arith.constant 0 : index
    %8 = vector.load %arg4[%c0_6, %c0_7] : memref<128x128xf32, #tpu.memory_space<vmem>>, vector<128x128xf32>
    %cst_8 = arith.constant dense<0.000000e+00> : vector<128x128xf32>
    %9 = tpu.matmul %7, %8, %cst_8 {dimension_numbers = #tpu.dot_dimension_numbers<[1], [0], [0], [1], [0, 0, 1, 1], [], []>} : vector<128x128xf32>, vector<128x128xf32>, vector<128x128xf32> -> vector<128x128xf32>
    %c0_9 = arith.constant 0 : index
    %c0_10 = arith.constant 0 : index
    %10 = vector.load %arg5[%c0_9, %c0_10] : memref<1x128xf32, #tpu.memory_space<vmem>>, vector<1x128xf32>
    %11 = vector.broadcast %10 : vector<1x128xf32> to vector<128x128xf32>
    %12 = arith.addf %9, %11 : vector<128x128xf32>
    %cst_11 = arith.constant 0.000000e+00 : f32
    %13 = vector.broadcast %cst_11 : f32 to vector<128x128xf32>
    %14 = arith.maximumf %12, %13 : vector<128x128xf32>
    %c0_12 = arith.constant 0 : index
    %c0_13 = arith.constant 0 : index
    %15 = vector.load %arg6[%c0_12, %c0_13] : memref<128x128xf32, #tpu.memory_space<vmem>>, vector<128x128xf32>
    %cst_14 = arith.constant dense<0.000000e+00> : vector<128x128xf32>
    %16 = tpu.matmul %14, %15, %cst_14 {dimension_numbers = #tpu.dot_dimension_numbers<[1], [0], [0], [1], [0, 0, 1, 1], [], []>} : vector<128x128xf32>, vector<128x128xf32>, vector<128x128xf32> -> vector<128x128xf32>
    %c0_15 = arith.constant 0 : index
    %c0_16 = arith.constant 0 : index
    %17 = vector.load %arg7[%c0_15, %c0_16] : memref<1x128xf32, #tpu.memory_space<vmem>>, vector<1x128xf32>
    %18 = vector.broadcast %17 : vector<1x128xf32> to vector<128x128xf32>
    %19 = arith.addf %16, %18 : vector<128x128xf32>
    %20 = tpu.iota {dimensions = array<i32: 1>} : vector<128x128xi32>
    %c8_i32 = arith.constant 8 : i32
    %21 = vector.broadcast %c8_i32 : i32 to vector<128x128xi32>
    %22 = arith.cmpi slt, %20, %21 : vector<128x128xi32>
    %cst_17 = arith.constant -1.000000e+30 : f32
    %23 = vector.broadcast %cst_17 : f32 to vector<128x128xf32>
    %24 = arith.select %22, %19, %23 : vector<128x128xi1>, vector<128x128xf32>
    %cst_18 = arith.constant dense<0xFF800000> : vector<128xf32>
    %25 = vector.multi_reduction <maximumf>, %24, %cst_18 [1] : vector<128x128xf32> to vector<128xf32>
    %26 = vector.shape_cast %25 : vector<128xf32> to vector<128x1xf32>
    %27 = vector.broadcast %26 : vector<128x1xf32> to vector<128x128xf32>
    %28 = arith.subf %24, %27 : vector<128x128xf32>
    %29 = math.exp %28 : vector<128x128xf32>
    %cst_19 = arith.constant dense<0.000000e+00> : vector<128xf32>
    %30 = vector.multi_reduction <add>, %29, %cst_19 [1] : vector<128x128xf32> to vector<128xf32>
    %31 = vector.shape_cast %30 : vector<128xf32> to vector<128x1xf32>
    %32 = vector.broadcast %31 : vector<128x1xf32> to vector<128x128xf32>
    %33 = arith.divf %29, %32 : vector<128x128xf32>
    %c0_20 = arith.constant 0 : index
    %c0_21 = arith.constant 0 : index
    %34 = vector.load %arg8[%c0_20, %c0_21] : memref<128x128xf32, #tpu.memory_space<vmem>>, vector<128x128xf32>
    tpu.vector_store %arg8[%c0_20, %c0_21], %33 {strides = array<i32>} : memref<128x128xf32, #tpu.memory_space<vmem>>, vector<128x128xf32>,
    return
  }
  func.func @transform_0(%arg0: i32) -> (i32, i32) {
    %c0_i32 = arith.constant 0 : i32
    %c0_i32_0 = arith.constant 0 : i32
    return %arg0, %c0_i32 : i32, i32
  }
  func.func @transform_1(%arg0: i32) -> (i32, i32) {
    %c0_i32 = arith.constant 0 : i32
    %c0_i32_0 = arith.constant 0 : i32
    %c0_i32_1 = arith.constant 0 : i32
    return %c0_i32, %c0_i32_0 : i32, i32
  }
  func.func @transform_2(%arg0: i32) -> (i32, i32) {
    %c0_i32 = arith.constant 0 : i32
    %c0_i32_0 = arith.constant 0 : i32
    %c0_i32_1 = arith.constant 0 : i32
    return %c0_i32, %c0_i32_0 : i32, i32
  }
  func.func @transform_3(%arg0: i32) -> (i32, i32) {
    %c0_i32 = arith.constant 0 : i32
    %c0_i32_0 = arith.constant 0 : i32
    %c0_i32_1 = arith.constant 0 : i32
    return %c0_i32, %c0_i32_0 : i32, i32
  }
  func.func @transform_4(%arg0: i32) -> (i32, i32) {
    %c0_i32 = arith.constant 0 : i32
    %c0_i32_0 = arith.constant 0 : i32
    %c0_i32_1 = arith.constant 0 : i32
    return %c0_i32, %c0_i32_0 : i32, i32
  }
  func.func @transform_5(%arg0: i32) -> (i32, i32) {
    %c0_i32 = arith.constant 0 : i32
    %c0_i32_0 = arith.constant 0 : i32
    %c0_i32_1 = arith.constant 0 : i32
    return %c0_i32, %c0_i32_0 : i32, i32
  }
  func.func @transform_6(%arg0: i32) -> (i32, i32) {
    %c0_i32 = arith.constant 0 : i32
    %c0_i32_0 = arith.constant 0 : i32
    %c0_i32_1 = arith.constant 0 : i32
    return %c0_i32, %c0_i32_0 : i32, i32
  }
  func.func @transform_7(%arg0: i32) -> (i32, i32) {
    %c0_i32 = arith.constant 0 : i32
    %c0_i32_0 = arith.constant 0 : i32
    return %arg0, %c0_i32 : i32, i32
  }
}

</mosaic_0001>

<llo_original>
// kernel: tpu_custom_call.1
$region0: #{tpu_custom_call.1}
  #allocation0 [shape = 'u32[]', space=smem, size = 0x4, offset = 0x4, fixed_abs, tag = 'smem constant byte address 0x4 - core index']
  #allocation1 [shape = 'u32[72,128]{1,0:T(1,128)}', space=vmem, size = 0x9000, scoped, tag = 'internal scratch']
  %s0 = inlined_call_operand.hbm [shape: f32[128,128], index: 0, kind: input, shape index: {}]
  %s1 = inlined_call_operand.hbm [shape: f32[128,128], index: 1, kind: input, shape index: {}]
  %s2 = inlined_call_operand.vmem [shape: f32[1,128], index: 2, kind: input, shape index: {}]
  %s3 = inlined_call_operand.hbm [shape: f32[128,128], index: 3, kind: input, shape index: {}]
  %s4 = inlined_call_operand.vmem [shape: f32[1,128], index: 4, kind: input, shape index: {}]
  %s5 = inlined_call_operand.hbm [shape: f32[128,128], index: 5, kind: input, shape index: {}]
  %s6 = inlined_call_operand.vmem [shape: f32[1,128], index: 6, kind: input, shape index: {}]
  %s7 = inlined_call_operand.hbm [shape: f32[128,128], index: 7, kind: output, shape index: {}]
  %s8 = sld [smem:[#allocation0]]
  $region54: #{tpu_custom_call.1} parent=0
    _
  %s10 = ssub.s32 1, %s8
  %s11 = scalar_select 0, %s10, %s8
  $region1: #{tpu_custom_call.1} parent=0
    #allocation2 [shape = 'u8[65536]{0}', space=vmem, size = 0x10000, scoped, tag = 'input window, operand 0, single buffered']
    #allocation3 [shape = 's32[1]{0}', space=sflag, size = 0x4, scoped, tag = 'scoped memory for tpu_custom_call.1']
    #allocation4 [shape = 's32[1]{0}', space=sflag, size = 0x4, scoped, tag = 'scoped memory for tpu_custom_call.1']
    #allocation5 [shape = 'u8[65536]{0}', space=vmem, size = 0x10000, scoped, tag = 'input window, operand 1, single buffered']
    #allocation6 [shape = 's32[1]{0}', space=sflag, size = 0x4, scoped, tag = 'scoped memory for tpu_custom_call.1']
    #allocation7 [shape = 'u8[65536]{0}', space=vmem, size = 0x10000, scoped, tag = 'input window, operand 3, single buffered']
    #allocation8 [shape = 'u8[65536]{0}', space=vmem, size = 0x10000, scoped, tag = 'input window, operand 5, single buffered']
    #allocation9 [shape = 's32[1]{0}', space=sflag, size = 0x4, scoped, tag = 'scoped memory for tpu_custom_call.1']
    #allocation10 [shape = 'u8[65536]{0}', space=vmem, size = 0x10000, scoped, tag = 'output window, operand 0, single buffered']
    %12 = vsyncpa [#allocation3], 0
    %13 = vsyncpa [#allocation6], 0
    %14 = vsyncpa [#allocation9], 0
    %15 = vsyncpa [#allocation4], 0
    // Predicated region
    $region2: #{tpu_custom_call.1} parent=1 // pred_check
      _
    $region3: #{tpu_custom_call.1} parent=1 // pred_check_branch
      %17 = sbr.rel (0) target = $region5
    $region4: #{tpu_custom_call.1} parent=1 // pred_region
      %19 = vsyncadd [#allocation3], 0
      %s20 = sshll.u32 %s0, 4
      %s21 = int_to_ptr.hbm [resolvable:$true] %s20
      %s22 = sshll.u32 [#allocation2], 4
      %s23 = int_to_ptr.vmem [resolvable:$true] %s22
      %28 = dma.hbm_to_vmem [thread:$0]  %s21, 2048, %s23, [#allocation3], 128, 128, 8
    $region5: #{tpu_custom_call.1} parent=1 // pred_fallthru
      _
    // Predicated region
    $region6: #{tpu_custom_call.1} parent=1 // pred_check
      _
    $region7: #{tpu_custom_call.1} parent=1 // pred_check_branch
      %30 = sbr.rel (0) target = $region9
    $region8: #{tpu_custom_call.1} parent=1 // pred_region
      %32 = vsyncadd [#allocation6], 0
      %s33 = sshll.u32 %s1, 4
      %s34 = int_to_ptr.hbm [resolvable:$true] %s33
      %s35 = sshll.u32 [#allocation5], 4
      %s36 = int_to_ptr.vmem [resolvable:$true] %s35
      %41 = dma.hbm_to_vmem [thread:$0]  %s34, 2048, %s36, [#allocation6], 128, 128, 8
    $region9: #{tpu_custom_call.1} parent=1 // pred_fallthru
      _
    // Predicated region
    $region10: #{tpu_custom_call.1} parent=1 // pred_check
      _
    $region11: #{tpu_custom_call.1} parent=1 // pred_check_branch
      %43 = sbr.rel (0) target = $region13
    $region12: #{tpu_custom_call.1} parent=1 // pred_region
      _
    $region13: #{tpu_custom_call.1} parent=1 // pred_fallthru
      _
    // Predicated region
    $region14: #{tpu_custom_call.1} parent=1 // pred_check
      _
    $region15: #{tpu_custom_call.1} parent=1 // pred_check_branch
      %45 = sbr.rel (0) target = $region17
    $region16: #{tpu_custom_call.1} parent=1 // pred_region
      %47 = vsyncadd [#allocation6], 0
      %s48 = sshll.u32 %s3, 4
      %s49 = int_to_ptr.hbm [resolvable:$true] %s48
      %s50 = sshll.u32 [#allocation7], 4
      %s51 = int_to_ptr.vmem [resolvable:$true] %s50
      %56 = dma.hbm_to_vmem [thread:$0]  %s49, 2048, %s51, [#allocation6], 128, 128, 8
    $region17: #{tpu_custom_call.1} parent=1 // pred_fallthru
      _
    // Predicated region
    $region18: #{tpu_custom_call.1} parent=1 // pred_check
      _
    $region19: #{tpu_custom_call.1} parent=1 // pred_check_branch
      %58 = sbr.rel (0) target = $region21
    $region20: #{tpu_custom_call.1} parent=1 // pred_region
      _
    $region21: #{tpu_custom_call.1} parent=1 // pred_fallthru
      _
    // Predicated region
    $region22: #{tpu_custom_call.1} parent=1 // pred_check
      _
    $region23: #{tpu_custom_call.1} parent=1 // pred_check_branch
      %60 = sbr.rel (0) target = $region25
    $region24: #{tpu_custom_call.1} parent=1 // pred_region
      %62 = vsyncadd [#allocation9], 0
      %s63 = sshll.u32 %s5, 4
      %s64 = int_to_ptr.hbm [resolvable:$true] %s63
      %s65 = sshll.u32 [#allocation8], 4
      %s66 = int_to_ptr.vmem [resolvable:$true] %s65
      %71 = dma.hbm_to_vmem [thread:$0]  %s64, 2048, %s66, [#allocation9], 128, 128, 8
    $region25: #{tpu_custom_call.1} parent=1 // pred_fallthru
      _
    // Predicated region
    $region26: #{tpu_custom_call.1} parent=1 // pred_check
      _
    $region27: #{tpu_custom_call.1} parent=1 // pred_check_branch
      %73 = sbr.rel (0) target = $region29
    $region28: #{tpu_custom_call.1} parent=1 // pred_region
      _
    $region29: #{tpu_custom_call.1} parent=1 // pred_fallthru
      _
    // Predicated region
    $region30: #{tpu_custom_call.1} parent=1 // pred_check
      _
    $region31: #{tpu_custom_call.1} parent=1 // pred_check_branch
      %75 = sbr.rel (0) target = $region33
    $region32: #{tpu_custom_call.1} parent=1 // pred_region
      %77 = dma.done [#allocation3], 2048
    $region33: #{tpu_custom_call.1} parent=1 // pred_fallthru
      _
    // Predicated region
    $region34: #{tpu_custom_call.1} parent=1 // pred_check
      _
    $region35: #{tpu_custom_call.1} parent=1 // pred_check_branch
      %79 = sbr.rel (0) target = $region37
    $region36: #{tpu_custom_call.1} parent=1 // pred_region
      %81 = dma.done [#allocation6], 2048
    $region37: #{tpu_custom_call.1} parent=1 // pred_fallthru
      _
    // Predicated region
    $region38: #{tpu_custom_call.1} parent=1 // pred_check
      _
    $region39: #{tpu_custom_call.1} parent=1 // pred_check_branch
      %83 = sbr.rel (0) target = $region41
    $region40: #{tpu_custom_call.1} parent=1 // pred_region
      %85 = dma.done [#allocation6], 2048
    $region41: #{tpu_custom_call.1} parent=1 // pred_fallthru
      _
    // Predicated region
    $region42: #{tpu_custom_call.1} parent=1 // pred_check
      _
    $region43: #{tpu_custom_call.1} parent=1 // pred_check_branch
      %87 = sbr.rel (0) target = $region45
    $region44: #{tpu_custom_call.1} parent=1 // pred_region
      %89 = dma.done [#allocation9], 2048
    $region45: #{tpu_custom_call.1} parent=1 // pred_fallthru
      _
    %v90 = vld [vmem:[#allocation2] sm:$0xff]
    %v91 = vld [vmem:[#allocation2 + $0x8] sm:$0xff]
    %v92 = vld [vmem:[#allocation2 + $0x10] sm:$0xff]
    %v93 = vld [vmem:[#allocation2 + $0x18] sm:$0xff]
    %v94 = vld [vmem:[#allocation2 + $0x20] sm:$0xff]
    %v95 = vld [vmem:[#allocation2 + $0x28] sm:$0xff]
    %v96 = vld [vmem:[#allocation2 + $0x30] sm:$0xff]
    %v97 = vld [vmem:[#allocation2 + $0x38] sm:$0xff]
    %v98 = vld [vmem:[#allocation2 + $0x40] sm:$0xff]
    %v99 = vld [vmem:[#allocation2 + $0x48] sm:$0xff]
    %v100 = vld [vmem:[#allocation2 + $0x50] sm:$0xff]
    %v101 = vld [vmem:[#allocation2 + $0x58] sm:$0xff]
    %v102 = vld [vmem:[#allocation2 + $0x60] sm:$0xff]
    %v103 = vld [vmem:[#allocation2 + $0x68] sm:$0xff]
    %v104 = vld [vmem:[#allocation2 + $0x70] sm:$0xff]
    %v105 = vld [vmem:[#allocation2 + $0x78] sm:$0xff]
    %v106 = vld [vmem:[#allocation5] sm:$0xff]
    %v107 = vld [vmem:[#allocation5 + $0x8] sm:$0xff]
    %v108 = vld [vmem:[#allocation5 + $0x10] sm:$0xff]
    %v109 = vld [vmem:[#allocation5 + $0x18] sm:$0xff]
    %v110 = vld [vmem:[#allocation5 + $0x20] sm:$0xff]
    %v111 = vld [vmem:[#allocation5 + $0x28] sm:$0xff]
    %v112 = vld [vmem:[#allocation5 + $0x30] sm:$0xff]
    %v113 = vld [vmem:[#allocation5 + $0x38] sm:$0xff]
    %v114 = vld [vmem:[#allocation5 + $0x40] sm:$0xff]
    %v115 = vld [vmem:[#allocation5 + $0x48] sm:$0xff]
    %v116 = vld [vmem:[#allocation5 + $0x50] sm:$0xff]
    %v117 = vld [vmem:[#allocation5 + $0x58] sm:$0xff]
    %v118 = vld [vmem:[#allocation5 + $0x60] sm:$0xff]
    %v119 = vld [vmem:[#allocation5 + $0x68] sm:$0xff]
    %v120 = vld [vmem:[#allocation5 + $0x70] sm:$0xff]
    %v121 = vld [vmem:[#allocation5 + $0x78] sm:$0xff]
    %v122 = vld [vmem:[%s2] sm:$0x1]
    %v124 = vperm.slane %v122, 0
    %126 = vmatpush.msra.mxu0 %v121
    %127 = vmatpush.msra.mxu0 %v120
    %128 = vmatpush.msra.mxu0 %v119
    %129 = vmatpush.msra.mxu0 %v118
    %130 = vmatpush.msra.mxu0 %v117
    %131 = vmatpush.msra.mxu0 %v116
    %132 = vmatpush.msra.mxu0 %v115
    %133 = vmatpush.msra.mxu0 %v114
    %134 = vmatpush.msra.mxu0 %v113
    %135 = vmatpush.msra.mxu0 %v112
    %136 = vmatpush.msra.mxu0 %v111
    %137 = vmatpush.msra.mxu0 %v110
    %138 = vmatpush.msra.mxu0 %v109
    %139 = vmatpush.msra.mxu0 %v108
    %140 = vmatpush.msra.mxu0 %v107
    %141 = vmatpush.msra.mxu0 %v106
    %142 = vmatmul.f32.gmra.mxu0 %v90
    %v143 = vpop.f32.mrf.mxu0
    %v144 = vadd.f32 %v124, %v143
    %145 = vmatmul.f32.gmra.mxu0 %v91
    %v146 = vpop.f32.mrf.mxu0
    %v147 = vadd.f32 %v124, %v146
    %148 = vmatmul.f32.gmra.mxu0 %v92
    %v149 = vpop.f32.mrf.mxu0
    %v150 = vadd.f32 %v124, %v149
    %151 = vmatmul.f32.gmra.mxu0 %v93
    %v152 = vpop.f32.mrf.mxu0
    %v153 = vadd.f32 %v124, %v152
    %154 = vmatmul.f32.gmra.mxu0 %v94
    %v155 = vpop.f32.mrf.mxu0
    %v156 = vadd.f32 %v124, %v155
    %157 = vmatmul.f32.gmra.mxu0 %v95
    %v158 = vpop.f32.mrf.mxu0
    %v159 = vadd.f32 %v124, %v158
    %160 = vmatmul.f32.gmra.mxu0 %v96
    %v161 = vpop.f32.mrf.mxu0
    %v162 = vadd.f32 %v124, %v161
    %163 = vmatmul.f32.gmra.mxu0 %v97
    %v164 = vpop.f32.mrf.mxu0
    %v165 = vadd.f32 %v124, %v164
    %166 = vmatmul.f32.gmra.mxu0 %v98
    %v167 = vpop.f32.mrf.mxu0
    %v168 = vadd.f32 %v124, %v167
    %169 = vmatmul.f32.gmra.mxu0 %v99
    %v170 = vpop.f32.mrf.mxu0
    %v171 = vadd.f32 %v124, %v170
    %172 = vmatmul.f32.gmra.mxu0 %v100
    %v173 = vpop.f32.mrf.mxu0
    %v174 = vadd.f32 %v124, %v173
    %175 = vmatmul.f32.gmra.mxu0 %v101
    %v176 = vpop.f32.mrf.mxu0
    %v177 = vadd.f32 %v124, %v176
    %178 = vmatmul.f32.gmra.mxu0 %v102
    %v179 = vpop.f32.mrf.mxu0
    %v180 = vadd.f32 %v124, %v179
    %181 = vmatmul.f32.gmra.mxu0 %v103
    %v182 = vpop.f32.mrf.mxu0
    %v183 = vadd.f32 %v124, %v182
    %184 = vmatmul.f32.gmra.mxu0 %v104
    %v185 = vpop.f32.mrf.mxu0
    %v186 = vadd.f32 %v124, %v185
    %187 = vmatmul.f32.gmra.mxu0 %v105
    %v188 = vpop.f32.mrf.mxu0
    %v189 = vadd.f32 %v124, %v188
    %190 = vdwg.mxu0
    %v191 = vmax.f32 %v144, 0.0
    %v192 = vmax.f32 %v147, 0.0
    %v193 = vmax.f32 %v150, 0.0
    %v194 = vmax.f32 %v153, 0.0
    %v195 = vmax.f32 %v156, 0.0
    %v196 = vmax.f32 %v159, 0.0
    %v197 = vmax.f32 %v162, 0.0
    %v198 = vmax.f32 %v165, 0.0
    %v199 = vmax.f32 %v168, 0.0
    %v200 = vmax.f32 %v171, 0.0
    %v201 = vmax.f32 %v174, 0.0
    %v202 = vmax.f32 %v177, 0.0
    %v203 = vmax.f32 %v180, 0.0
    %v204 = vmax.f32 %v183, 0.0
    %v205 = vmax.f32 %v186, 0.0
    %v206 = vmax.f32 %v189, 0.0
    %v207 = vld [vmem:[#allocation7] sm:$0xff]
    %v208 = vld [vmem:[#allocation7 + $0x8] sm:$0xff]
    %v209 = vld [vmem:[#allocation7 + $0x10] sm:$0xff]
    %v210 = vld [vmem:[#allocation7 + $0x18] sm:$0xff]
    %v211 = vld [vmem:[#allocation7 + $0x20] sm:$0xff]
    %v212 = vld [vmem:[#allocation7 + $0x28] sm:$0xff]
    %v213 = vld [vmem:[#allocation7 + $0x30] sm:$0xff]
    %v214 = vld [vmem:[#allocation7 + $0x38] sm:$0xff]
    %v215 = vld [vmem:[#allocation7 + $0x40] sm:$0xff]
    %v216 = vld [vmem:[#allocation7 + $0x48] sm:$0xff]
    %v217 = vld [vmem:[#allocation7 + $0x50] sm:$0xff]
    %v218 = vld [vmem:[#allocation7 + $0x58] sm:$0xff]
    %v219 = vld [vmem:[#allocation7 + $0x60] sm:$0xff]
    %v220 = vld [vmem:[#allocation7 + $0x68] sm:$0xff]
    %v221 = vld [vmem:[#allocation7 + $0x70] sm:$0xff]
    %v222 = vld [vmem:[#allocation7 + $0x78] sm:$0xff]
    %v223 = vld [vmem:[%s4] sm:$0x1]
    %v225 = vperm.slane %v223, 0
    %227 = vmatpush.msra.mxu0 %v222
    %228 = vmatpush.msra.mxu0 %v221
    %229 = vmatpush.msra.mxu0 %v220
    %230 = vmatpush.msra.mxu0 %v219
    %231 = vmatpush.msra.mxu0 %v218
    %232 = vmatpush.msra.mxu0 %v217
    %233 = vmatpush.msra.mxu0 %v216
    %234 = vmatpush.msra.mxu0 %v215
    %235 = vmatpush.msra.mxu0 %v214
    %236 = vmatpush.msra.mxu0 %v213
    %237 = vmatpush.msra.mxu0 %v212
    %238 = vmatpush.msra.mxu0 %v211
    %239 = vmatpush.msra.mxu0 %v210
    %240 = vmatpush.msra.mxu0 %v209
    %241 = vmatpush.msra.mxu0 %v208
    %242 = vmatpush.msra.mxu0 %v207
    %243 = vmatmul.f32.gmra.mxu0 %v191
    %v244 = vpop.f32.mrf.mxu0
    %v245 = vadd.f32 %v225, %v244
    %246 = vmatmul.f32.gmra.mxu0 %v192
    %v247 = vpop.f32.mrf.mxu0
    %v248 = vadd.f32 %v225, %v247
    %249 = vmatmul.f32.gmra.mxu0 %v193
    %v250 = vpop.f32.mrf.mxu0
    %v251 = vadd.f32 %v225, %v250
    %252 = vmatmul.f32.gmra.mxu0 %v194
    %v253 = vpop.f32.mrf.mxu0
    %v254 = vadd.f32 %v225, %v253
    %255 = vmatmul.f32.gmra.mxu0 %v195
    %v256 = vpop.f32.mrf.mxu0
    %v257 = vadd.f32 %v225, %v256
    %258 = vmatmul.f32.gmra.mxu0 %v196
    %v259 = vpop.f32.mrf.mxu0
    %v260 = vadd.f32 %v225, %v259
    %261 = vmatmul.f32.gmra.mxu0 %v197
    %v262 = vpop.f32.mrf.mxu0
    %v263 = vadd.f32 %v225, %v262
    %264 = vmatmul.f32.gmra.mxu0 %v198
    %v265 = vpop.f32.mrf.mxu0
    %v266 = vadd.f32 %v225, %v265
    %267 = vmatmul.f32.gmra.mxu0 %v199
    %v268 = vpop.f32.mrf.mxu0
    %v269 = vadd.f32 %v225, %v268
    %270 = vmatmul.f32.gmra.mxu0 %v200
    %v271 = vpop.f32.mrf.mxu0
    %v272 = vadd.f32 %v225, %v271
    %273 = vmatmul.f32.gmra.mxu0 %v201
    %v274 = vpop.f32.mrf.mxu0
    %v275 = vadd.f32 %v225, %v274
    %276 = vmatmul.f32.gmra.mxu0 %v202
    %v277 = vpop.f32.mrf.mxu0
    %v278 = vadd.f32 %v225, %v277
    %279 = vmatmul.f32.gmra.mxu0 %v203
    %v280 = vpop.f32.mrf.mxu0
    %v281 = vadd.f32 %v225, %v280
    %282 = vmatmul.f32.gmra.mxu0 %v204
    %v283 = vpop.f32.mrf.mxu0
    %v284 = vadd.f32 %v225, %v283
    %285 = vmatmul.f32.gmra.mxu0 %v205
    %v286 = vpop.f32.mrf.mxu0
    %v287 = vadd.f32 %v225, %v286
    %288 = vmatmul.f32.gmra.mxu0 %v206
    %v289 = vpop.f32.mrf.mxu0
    %v290 = vadd.f32 %v225, %v289
    %291 = vdwg.mxu0
    %v292 = vmax.f32 %v245, 0.0
    %v293 = vmax.f32 %v248, 0.0
    %v294 = vmax.f32 %v251, 0.0
    %v295 = vmax.f32 %v254, 0.0
    %v296 = vmax.f32 %v257, 0.0
    %v297 = vmax.f32 %v260, 0.0
    %v298 = vmax.f32 %v263, 0.0
    %v299 = vmax.f32 %v266, 0.0
    %v300 = vmax.f32 %v269, 0.0
    %v301 = vmax.f32 %v272, 0.0
    %v302 = vmax.f32 %v275, 0.0
    %v303 = vmax.f32 %v278, 0.0
    %v304 = vmax.f32 %v281, 0.0
    %v305 = vmax.f32 %v284, 0.0
    %v306 = vmax.f32 %v287, 0.0
    %v307 = vmax.f32 %v290, 0.0
    %v308 = vld [vmem:[#allocation8] sm:$0xff]
    %v309 = vld [vmem:[#allocation8 + $0x8] sm:$0xff]
    %v310 = vld [vmem:[#allocation8 + $0x10] sm:$0xff]
    %v311 = vld [vmem:[#allocation8 + $0x18] sm:$0xff]
    %v312 = vld [vmem:[#allocation8 + $0x20] sm:$0xff]
    %v313 = vld [vmem:[#allocation8 + $0x28] sm:$0xff]
    %v314 = vld [vmem:[#allocation8 + $0x30] sm:$0xff]
    %v315 = vld [vmem:[#allocation8 + $0x38] sm:$0xff]
    %v316 = vld [vmem:[#allocation8 + $0x40] sm:$0xff]
    %v317 = vld [vmem:[#allocation8 + $0x48] sm:$0xff]
    %v318 = vld [vmem:[#allocation8 + $0x50] sm:$0xff]
    %v319 = vld [vmem:[#allocation8 + $0x58] sm:$0xff]
    %v320 = vld [vmem:[#allocation8 + $0x60] sm:$0xff]
    %v321 = vld [vmem:[#allocation8 + $0x68] sm:$0xff]
    %v322 = vld [vmem:[#allocation8 + $0x70] sm:$0xff]
    %v323 = vld [vmem:[#allocation8 + $0x78] sm:$0xff]
    %v324 = vld [vmem:[%s6] sm:$0x1]
    %v326 = vperm.slane %v324, 0
    %328 = vmatpush.msra.mxu0 %v323
    %329 = vmatpush.msra.mxu0 %v322
    %330 = vmatpush.msra.mxu0 %v321
    %331 = vmatpush.msra.mxu0 %v320
    %332 = vmatpush.msra.mxu0 %v319
    %333 = vmatpush.msra.mxu0 %v318
    %334 = vmatpush.msra.mxu0 %v317
    %335 = vmatpush.msra.mxu0 %v316
    %336 = vmatpush.msra.mxu0 %v315
    %337 = vmatpush.msra.mxu0 %v314
    %338 = vmatpush.msra.mxu0 %v313
    %339 = vmatpush.msra.mxu0 %v312
    %340 = vmatpush.msra.mxu0 %v311
    %341 = vmatpush.msra.mxu0 %v310
    %342 = vmatpush.msra.mxu0 %v309
    %343 = vmatpush.msra.mxu0 %v308
    %344 = vmatmul.f32.gmra.mxu0 %v292
    %v345 = vpop.f32.mrf.mxu0
    %v346 = vadd.f32 %v326, %v345
    %347 = vmatmul.f32.gmra.mxu0 %v293
    %v348 = vpop.f32.mrf.mxu0
    %v349 = vadd.f32 %v326, %v348
    %350 = vmatmul.f32.gmra.mxu0 %v294
    %v351 = vpop.f32.mrf.mxu0
    %v352 = vadd.f32 %v326, %v351
    %353 = vmatmul.f32.gmra.mxu0 %v295
    %v354 = vpop.f32.mrf.mxu0
    %v355 = vadd.f32 %v326, %v354
    %356 = vmatmul.f32.gmra.mxu0 %v296
    %v357 = vpop.f32.mrf.mxu0
    %v358 = vadd.f32 %v326, %v357
    %359 = vmatmul.f32.gmra.mxu0 %v297
    %v360 = vpop.f32.mrf.mxu0
    %v361 = vadd.f32 %v326, %v360
    %362 = vmatmul.f32.gmra.mxu0 %v298
    %v363 = vpop.f32.mrf.mxu0
    %v364 = vadd.f32 %v326, %v363
    %365 = vmatmul.f32.gmra.mxu0 %v299
    %v366 = vpop.f32.mrf.mxu0
    %v367 = vadd.f32 %v326, %v366
    %368 = vmatmul.f32.gmra.mxu0 %v300
    %v369 = vpop.f32.mrf.mxu0
    %v370 = vadd.f32 %v326, %v369
    %371 = vmatmul.f32.gmra.mxu0 %v301
    %v372 = vpop.f32.mrf.mxu0
    %v373 = vadd.f32 %v326, %v372
    %374 = vmatmul.f32.gmra.mxu0 %v302
    %v375 = vpop.f32.mrf.mxu0
    %v376 = vadd.f32 %v326, %v375
    %377 = vmatmul.f32.gmra.mxu0 %v303
    %v378 = vpop.f32.mrf.mxu0
    %v379 = vadd.f32 %v326, %v378
    %380 = vmatmul.f32.gmra.mxu0 %v304
    %v381 = vpop.f32.mrf.mxu0
    %v382 = vadd.f32 %v326, %v381
    %383 = vmatmul.f32.gmra.mxu0 %v305
    %v384 = vpop.f32.mrf.mxu0
    %v385 = vadd.f32 %v326, %v384
    %386 = vmatmul.f32.gmra.mxu0 %v306
    %v387 = vpop.f32.mrf.mxu0
    %v388 = vadd.f32 %v326, %v387
    %389 = vmatmul.f32.gmra.mxu0 %v307
    %v390 = vpop.f32.mrf.mxu0
    %v391 = vadd.f32 %v326, %v390
    %392 = vdwg.mxu0
    %v393 = vlaneseq
    %v394 = vand.u32 %v393, 127
    %vm395 = vcmp.lt.s32.totalorder %v394, 8
    %v396 = vsel %vm395, %v346, -1e+30
    %v397 = vsel %vm395, %v349, -1e+30
    %v398 = vsel %vm395, %v352, -1e+30
    %v399 = vsel %vm395, %v355, -1e+30
    %v400 = vsel %vm395, %v358, -1e+30
    %v401 = vsel %vm395, %v361, -1e+30
    %v402 = vsel %vm395, %v364, -1e+30
    %v403 = vsel %vm395, %v367, -1e+30
    %v404 = vsel %vm395, %v370, -1e+30
    %v405 = vsel %vm395, %v373, -1e+30
    %v406 = vsel %vm395, %v376, -1e+30
    %v407 = vsel %vm395, %v379, -1e+30
    %v408 = vsel %vm395, %v382, -1e+30
    %v409 = vsel %vm395, %v385, -1e+30
    %v410 = vsel %vm395, %v388, -1e+30
    %v411 = vsel %vm395, %v391, -1e+30
    %412 = vmax.xlane.f32.xlu0 %v396
    %v413 = vpop.xlane.xlu0 %412
    %414 = vmax.xlane.f32.xlu0 %v397
    %v415 = vpop.xlane.xlu0 %414
    %416 = vmax.xlane.f32.xlu0 %v398
    %v417 = vpop.xlane.xlu0 %416
    %418 = vmax.xlane.f32.xlu0 %v399
    %v419 = vpop.xlane.xlu0 %418
    %420 = vmax.xlane.f32.xlu0 %v400
    %v421 = vpop.xlane.xlu0 %420
    %422 = vmax.xlane.f32.xlu0 %v401
    %v423 = vpop.xlane.xlu0 %422
    %424 = vmax.xlane.f32.xlu0 %v402
    %v425 = vpop.xlane.xlu0 %424
    %426 = vmax.xlane.f32.xlu0 %v403
    %v427 = vpop.xlane.xlu0 %426
    %428 = vmax.xlane.f32.xlu0 %v404
    %v429 = vpop.xlane.xlu0 %428
    %430 = vmax.xlane.f32.xlu0 %v405
    %v431 = vpop.xlane.xlu0 %430
    %432 = vmax.xlane.f32.xlu0 %v406
    %v433 = vpop.xlane.xlu0 %432
    %434 = vmax.xlane.f32.xlu0 %v407
    %v435 = vpop.xlane.xlu0 %434
    %436 = vmax.xlane.f32.xlu0 %v408
    %v437 = vpop.xlane.xlu0 %436
    %438 = vmax.xlane.f32.xlu0 %v409
    %v439 = vpop.xlane.xlu0 %438
    %440 = vmax.xlane.f32.xlu0 %v410
    %v441 = vpop.xlane.xlu0 %440
    %442 = vmax.xlane.f32.xlu0 %v411
    %v443 = vpop.xlane.xlu0 %442
    %v444 = vsub.f32 %v396, %v413
    %v445 = vsub.f32 %v397, %v415
    %v446 = vsub.f32 %v398, %v417
    %v447 = vsub.f32 %v399, %v419
    %v448 = vsub.f32 %v400, %v421
    %v449 = vsub.f32 %v401, %v423
    %v450 = vsub.f32 %v402, %v425
    %v451 = vsub.f32 %v403, %v427
    %v452 = vsub.f32 %v404, %v429
    %v453 = vsub.f32 %v405, %v431
    %v454 = vsub.f32 %v406, %v433
    %v455 = vsub.f32 %v407, %v435
    %v456 = vsub.f32 %v408, %v437
    %v457 = vsub.f32 %v409, %v439
    %v458 = vsub.f32 %v410, %v441
    %v459 = vsub.f32 %v411, %v443
    %v460 = vmul.f32 %v444, 1.442695
    %v461 = vpow.pop %v460
    %v462 = vmul.f32 %v445, 1.442695
    %v463 = vpow.pop %v462
    %v464 = vmul.f32 %v446, 1.442695
    %v465 = vpow.pop %v464
    %v466 = vmul.f32 %v447, 1.442695
    %v467 = vpow.pop %v466
    %v468 = vmul.f32 %v448, 1.442695
    %v469 = vpow.pop %v468
    %v470 = vmul.f32 %v449, 1.442695
    %v471 = vpow.pop %v470
    %v472 = vmul.f32 %v450, 1.442695
    %v473 = vpow.pop %v472
    %v474 = vmul.f32 %v451, 1.442695
    %v475 = vpow.pop %v474
    %v476 = vmul.f32 %v452, 1.442695
    %v477 = vpow.pop %v476
    %v478 = vmul.f32 %v453, 1.442695
    %v479 = vpow.pop %v478
    %v480 = vmul.f32 %v454, 1.442695
    %v481 = vpow.pop %v480
    %v482 = vmul.f32 %v455, 1.442695
    %v483 = vpow.pop %v482
    %v484 = vmul.f32 %v456, 1.442695
    %v485 = vpow.pop %v484
    %v486 = vmul.f32 %v457, 1.442695
    %v487 = vpow.pop %v486
    %v488 = vmul.f32 %v458, 1.442695
    %v489 = vpow.pop %v488
    %v490 = vmul.f32 %v459, 1.442695
    %v491 = vpow.pop %v490
    %492 = vadd.xlane.f32.xlu0 %v461
    %v493 = vpop.xlane.xlu0 %492
    %494 = vadd.xlane.f32.xlu0 %v463
    %v495 = vpop.xlane.xlu0 %494
    %496 = vadd.xlane.f32.xlu0 %v465
    %v497 = vpop.xlane.xlu0 %496
    %498 = vadd.xlane.f32.xlu0 %v467
    %v499 = vpop.xlane.xlu0 %498
    %500 = vadd.xlane.f32.xlu0 %v469
    %v501 = vpop.xlane.xlu0 %500
    %502 = vadd.xlane.f32.xlu0 %v471
    %v503 = vpop.xlane.xlu0 %502
    %504 = vadd.xlane.f32.xlu0 %v473
    %v505 = vpop.xlane.xlu0 %504
    %506 = vadd.xlane.f32.xlu0 %v475
    %v507 = vpop.xlane.xlu0 %506
    %508 = vadd.xlane.f32.xlu0 %v477
    %v509 = vpop.xlane.xlu0 %508
    %510 = vadd.xlane.f32.xlu0 %v479
    %v511 = vpop.xlane.xlu0 %510
    %512 = vadd.xlane.f32.xlu0 %v481
    %v513 = vpop.xlane.xlu0 %512
    %514 = vadd.xlane.f32.xlu0 %v483
    %v515 = vpop.xlane.xlu0 %514
    %516 = vadd.xlane.f32.xlu0 %v485
    %v517 = vpop.xlane.xlu0 %516
    %518 = vadd.xlane.f32.xlu0 %v487
    %v519 = vpop.xlane.xlu0 %518
    %520 = vadd.xlane.f32.xlu0 %v489
    %v521 = vpop.xlane.xlu0 %520
    %522 = vadd.xlane.f32.xlu0 %v491
    %v523 = vpop.xlane.xlu0 %522
    %v524 = vrcp.pop %v493
    %v525 = vmul.f32 %v493, %v524
    %v526 = vsub.f32 1.0, %v525
    %v527 = vmul.f32 %v524, %v526
    %v528 = vadd.f32 %v524, %v527
    %vm529 = vweird.f32 %v493
    %vm530 = vweird.f32 %v524
    %vm531 = vmor %vm529, %vm530
    %v532 = vsel %vm531, %v524, %v528
    %v533 = vand.u32 2147483647, %v493
    %vm534 = vcmp.eq.f32.partialorder %v533, 8.507059e+37
    %v535 = vand.u32 %v493, 2147483648
    %v536 = vor.u32 1.1754944e-38, %v535
    %v537 = vsel %vm534, %v536, %v532
    %v538 = vmul.f32 %v461, %v537
    %v539 = vrcp.pop %v495
    %v540 = vmul.f32 %v495, %v539
    %v541 = vsub.f32 1.0, %v540
    %v542 = vmul.f32 %v539, %v541
    %v543 = vadd.f32 %v539, %v542
    %vm544 = vweird.f32 %v495
    %vm545 = vweird.f32 %v539
    %vm546 = vmor %vm544, %vm545
    %v547 = vsel %vm546, %v539, %v543
    %v548 = vand.u32 2147483647, %v495
    %vm549 = vcmp.eq.f32.partialorder %v548, 8.507059e+37
    %v550 = vand.u32 %v495, 2147483648
    %v551 = vor.u32 1.1754944e-38, %v550
    %v552 = vsel %vm549, %v551, %v547
    %v553 = vmul.f32 %v463, %v552
    %v554 = vrcp.pop %v497
    %v555 = vmul.f32 %v497, %v554
    %v556 = vsub.f32 1.0, %v555
    %v557 = vmul.f32 %v554, %v556
    %v558 = vadd.f32 %v554, %v557
    %vm559 = vweird.f32 %v497
    %vm560 = vweird.f32 %v554
    %vm561 = vmor %vm559, %vm560
    %v562 = vsel %vm561, %v554, %v558
    %v563 = vand.u32 2147483647, %v497
    %vm564 = vcmp.eq.f32.partialorder %v563, 8.507059e+37
    %v565 = vand.u32 %v497, 2147483648
    %v566 = vor.u32 1.1754944e-38, %v565
    %v567 = vsel %vm564, %v566, %v562
    %v568 = vmul.f32 %v465, %v567
    %v569 = vrcp.pop %v499
    %v570 = vmul.f32 %v499, %v569
    %v571 = vsub.f32 1.0, %v570
    %v572 = vmul.f32 %v569, %v571
    %v573 = vadd.f32 %v569, %v572
    %vm574 = vweird.f32 %v499
    %vm575 = vweird.f32 %v569
    %vm576 = vmor %vm574, %vm575
    %v577 = vsel %vm576, %v569, %v573
    %v578 = vand.u32 2147483647, %v499
    %vm579 = vcmp.eq.f32.partialorder %v578, 8.507059e+37
    %v580 = vand.u32 %v499, 2147483648
    %v581 = vor.u32 1.1754944e-38, %v580
    %v582 = vsel %vm579, %v581, %v577
    %v583 = vmul.f32 %v467, %v582
    %v584 = vrcp.pop %v501
    %v585 = vmul.f32 %v501, %v584
    %v586 = vsub.f32 1.0, %v585
    %v587 = vmul.f32 %v584, %v586
    %v588 = vadd.f32 %v584, %v587
    %vm589 = vweird.f32 %v501
    %vm590 = vweird.f32 %v584
    %vm591 = vmor %vm589, %vm590
    %v592 = vsel %vm591, %v584, %v588
    %v593 = vand.u32 2147483647, %v501
    %vm594 = vcmp.eq.f32.partialorder %v593, 8.507059e+37
    %v595 = vand.u32 %v501, 2147483648
    %v596 = vor.u32 1.1754944e-38, %v595
    %v597 = vsel %vm594, %v596, %v592
    %v598 = vmul.f32 %v469, %v597
    %v599 = vrcp.pop %v503
    %v600 = vmul.f32 %v503, %v599
    %v601 = vsub.f32 1.0, %v600
    %v602 = vmul.f32 %v599, %v601
    %v603 = vadd.f32 %v599, %v602
    %vm604 = vweird.f32 %v503
    %vm605 = vweird.f32 %v599
    %vm606 = vmor %vm604, %vm605
    %v607 = vsel %vm606, %v599, %v603
    %v608 = vand.u32 2147483647, %v503
    %vm609 = vcmp.eq.f32.partialorder %v608, 8.507059e+37
    %v610 = vand.u32 %v503, 2147483648
    %v611 = vor.u32 1.1754944e-38, %v610
    %v612 = vsel %vm609, %v611, %v607
    %v613 = vmul.f32 %v471, %v612
    %v614 = vrcp.pop %v505
    %v615 = vmul.f32 %v505, %v614
    %v616 = vsub.f32 1.0, %v615
    %v617 = vmul.f32 %v614, %v616
    %v618 = vadd.f32 %v614, %v617
    %vm619 = vweird.f32 %v505
    %vm620 = vweird.f32 %v614
    %vm621 = vmor %vm619, %vm620
    %v622 = vsel %vm621, %v614, %v618
    %v623 = vand.u32 2147483647, %v505
    %vm624 = vcmp.eq.f32.partialorder %v623, 8.507059e+37
    %v625 = vand.u32 %v505, 2147483648
    %v626 = vor.u32 1.1754944e-38, %v625
    %v627 = vsel %vm624, %v626, %v622
    %v628 = vmul.f32 %v473, %v627
    %v629 = vrcp.pop %v507
    %v630 = vmul.f32 %v507, %v629
    %v631 = vsub.f32 1.0, %v630
    %v632 = vmul.f32 %v629, %v631
    %v633 = vadd.f32 %v629, %v632
    %vm634 = vweird.f32 %v507
    %vm635 = vweird.f32 %v629
    %vm636 = vmor %vm634, %vm635
    %v637 = vsel %vm636, %v629, %v633
    %v638 = vand.u32 2147483647, %v507
    %vm639 = vcmp.eq.f32.partialorder %v638, 8.507059e+37
    %v640 = vand.u32 %v507, 2147483648
    %v641 = vor.u32 1.1754944e-38, %v640
    %v642 = vsel %vm639, %v641, %v637
    %v643 = vmul.f32 %v475, %v642
    %v644 = vrcp.pop %v509
    %v645 = vmul.f32 %v509, %v644
    %v646 = vsub.f32 1.0, %v645
    %v647 = vmul.f32 %v644, %v646
    %v648 = vadd.f32 %v644, %v647
    %vm649 = vweird.f32 %v509
    %vm650 = vweird.f32 %v644
    %vm651 = vmor %vm649, %vm650
    %v652 = vsel %vm651, %v644, %v648
    %v653 = vand.u32 2147483647, %v509
    %vm654 = vcmp.eq.f32.partialorder %v653, 8.507059e+37
    %v655 = vand.u32 %v509, 2147483648
    %v656 = vor.u32 1.1754944e-38, %v655
    %v657 = vsel %vm654, %v656, %v652
    %v658 = vmul.f32 %v477, %v657
    %v659 = vrcp.pop %v511
    %v660 = vmul.f32 %v511, %v659
    %v661 = vsub.f32 1.0, %v660
    %v662 = vmul.f32 %v659, %v661
    %v663 = vadd.f32 %v659, %v662
    %vm664 = vweird.f32 %v511
    %vm665 = vweird.f32 %v659
    %vm666 = vmor %vm664, %vm665
    %v667 = vsel %vm666, %v659, %v663
    %v668 = vand.u32 2147483647, %v511
    %vm669 = vcmp.eq.f32.partialorder %v668, 8.507059e+37
    %v670 = vand.u32 %v511, 2147483648
    %v671 = vor.u32 1.1754944e-38, %v670
    %v672 = vsel %vm669, %v671, %v667
    %v673 = vmul.f32 %v479, %v672
    %v674 = vrcp.pop %v513
    %v675 = vmul.f32 %v513, %v674
    %v676 = vsub.f32 1.0, %v675
    %v677 = vmul.f32 %v674, %v676
    %v678 = vadd.f32 %v674, %v677
    %vm679 = vweird.f32 %v513
    %vm680 = vweird.f32 %v674
    %vm681 = vmor %vm679, %vm680
    %v682 = vsel %vm681, %v674, %v678
    %v683 = vand.u32 2147483647, %v513
    %vm684 = vcmp.eq.f32.partialorder %v683, 8.507059e+37
    %v685 = vand.u32 %v513, 2147483648
    %v686 = vor.u32 1.1754944e-38, %v685
    %v687 = vsel %vm684, %v686, %v682
    %v688 = vmul.f32 %v481, %v687
    %v689 = vrcp.pop %v515
    %v690 = vmul.f32 %v515, %v689
    %v691 = vsub.f32 1.0, %v690
    %v692 = vmul.f32 %v689, %v691
    %v693 = vadd.f32 %v689, %v692
    %vm694 = vweird.f32 %v515
    %vm695 = vweird.f32 %v689
    %vm696 = vmor %vm694, %vm695
    %v697 = vsel %vm696, %v689, %v693
    %v698 = vand.u32 2147483647, %v515
    %vm699 = vcmp.eq.f32.partialorder %v698, 8.507059e+37
    %v700 = vand.u32 %v515, 2147483648
    %v701 = vor.u32 1.1754944e-38, %v700
    %v702 = vsel %vm699, %v701, %v697
    %v703 = vmul.f32 %v483, %v702
    %v704 = vrcp.pop %v517
    %v705 = vmul.f32 %v517, %v704
    %v706 = vsub.f32 1.0, %v705
    %v707 = vmul.f32 %v704, %v706
    %v708 = vadd.f32 %v704, %v707
    %vm709 = vweird.f32 %v517
    %vm710 = vweird.f32 %v704
    %vm711 = vmor %vm709, %vm710
    %v712 = vsel %vm711, %v704, %v708
    %v713 = vand.u32 2147483647, %v517
    %vm714 = vcmp.eq.f32.partialorder %v713, 8.507059e+37
    %v715 = vand.u32 %v517, 2147483648
    %v716 = vor.u32 1.1754944e-38, %v715
    %v717 = vsel %vm714, %v716, %v712
    %v718 = vmul.f32 %v485, %v717
    %v719 = vrcp.pop %v519
    %v720 = vmul.f32 %v519, %v719
    %v721 = vsub.f32 1.0, %v720
    %v722 = vmul.f32 %v719, %v721
    %v723 = vadd.f32 %v719, %v722
    %vm724 = vweird.f32 %v519
    %vm725 = vweird.f32 %v719
    %vm726 = vmor %vm724, %vm725
    %v727 = vsel %vm726, %v719, %v723
    %v728 = vand.u32 2147483647, %v519
    %vm729 = vcmp.eq.f32.partialorder %v728, 8.507059e+37
    %v730 = vand.u32 %v519, 2147483648
    %v731 = vor.u32 1.1754944e-38, %v730
    %v732 = vsel %vm729, %v731, %v727
    %v733 = vmul.f32 %v487, %v732
    %v734 = vrcp.pop %v521
    %v735 = vmul.f32 %v521, %v734
    %v736 = vsub.f32 1.0, %v735
    %v737 = vmul.f32 %v734, %v736
    %v738 = vadd.f32 %v734, %v737
    %vm739 = vweird.f32 %v521
    %vm740 = vweird.f32 %v734
    %vm741 = vmor %vm739, %vm740
    %v742 = vsel %vm741, %v734, %v738
    %v743 = vand.u32 2147483647, %v521
    %vm744 = vcmp.eq.f32.partialorder %v743, 8.507059e+37
    %v745 = vand.u32 %v521, 2147483648
    %v746 = vor.u32 1.1754944e-38, %v745
    %v747 = vsel %vm744, %v746, %v742
    %v748 = vmul.f32 %v489, %v747
    %v749 = vrcp.pop %v523
    %v750 = vmul.f32 %v523, %v749
    %v751 = vsub.f32 1.0, %v750
    %v752 = vmul.f32 %v749, %v751
    %v753 = vadd.f32 %v749, %v752
    %vm754 = vweird.f32 %v523
    %vm755 = vweird.f32 %v749
    %vm756 = vmor %vm754, %vm755
    %v757 = vsel %vm756, %v749, %v753
    %v758 = vand.u32 2147483647, %v523
    %vm759 = vcmp.eq.f32.partialorder %v758, 8.507059e+37
    %v760 = vand.u32 %v523, 2147483648
    %v761 = vor.u32 1.1754944e-38, %v760
    %v762 = vsel %vm759, %v761, %v757
    %v763 = vmul.f32 %v491, %v762
    %764 = vst [vmem:[#allocation10] sm:$0xff] %v538
    %765 = vst [vmem:[#allocation10 + $0x8] sm:$0xff] %v553
    %766 = vst [vmem:[#allocation10 + $0x10] sm:$0xff] %v568
    %767 = vst [vmem:[#allocation10 + $0x18] sm:$0xff] %v583
    %768 = vst [vmem:[#allocation10 + $0x20] sm:$0xff] %v598
    %769 = vst [vmem:[#allocation10 + $0x28] sm:$0xff] %v613
    %770 = vst [vmem:[#allocation10 + $0x30] sm:$0xff] %v628
    %771 = vst [vmem:[#allocation10 + $0x38] sm:$0xff] %v643
    %772 = vst [vmem:[#allocation10 + $0x40] sm:$0xff] %v658
    %773 = vst [vmem:[#allocation10 + $0x48] sm:$0xff] %v673
    %774 = vst [vmem:[#allocation10 + $0x50] sm:$0xff] %v688
    %775 = vst [vmem:[#allocation10 + $0x58] sm:$0xff] %v703
    %776 = vst [vmem:[#allocation10 + $0x60] sm:$0xff] %v718
    %777 = vst [vmem:[#allocation10 + $0x68] sm:$0xff] %v733
    %778 = vst [vmem:[#allocation10 + $0x70] sm:$0xff] %v748
    %779 = vst [vmem:[#allocation10 + $0x78] sm:$0xff] %v763
    // Predicated region
    $region46: #{tpu_custom_call.1} parent=1 // pred_check
      _
    $region47: #{tpu_custom_call.1} parent=1 // pred_check_branch
      %781 = sbr.rel (0) target = $region49
    $region48: #{tpu_custom_call.1} parent=1 // pred_region
      %783 = vsyncadd [#allocation4], 0
      %s784 = sshll.u32 [#allocation10], 4
      %s785 = int_to_ptr.vmem [resolvable:$true] %s784
      %s786 = sshll.u32 %s7, 4
      %s787 = int_to_ptr.hbm [resolvable:$true] %s786
      %792 = dma.vmem_to_hbm [thread:$0]  %s785, 2048, %s787, [#allocation4], 128, 128, 8
    $region49: #{tpu_custom_call.1} parent=1 // pred_fallthru
      _
    // Predicated region
    $region50: #{tpu_custom_call.1} parent=1 // pred_check
      _
    $region51: #{tpu_custom_call.1} parent=1 // pred_check_branch
      %794 = sbr.rel (0) target = $region53
    $region52: #{tpu_custom_call.1} parent=1 // pred_region
      %796 = dma.done [#allocation4], 2048
    $region53: #{tpu_custom_call.1} parent=1 // pred_fallthru
      _
    %797 = vsyncpa [#allocation3], 1
    %798 = vsyncpa [#allocation6], 1
    %799 = vsyncpa [#allocation9], 1
    %800 = vsyncpa [#allocation4], 1

</llo_original>
